<compile_context>
chip_gen: v6e
topology: v6e:2x2x1
jax: 0.10.0
libtpu: 0.0.40
codegen_flags: <defaults>
</compile_context>

<pallas_src>
import functools
import math

import jax
import jax.numpy as jnp
from jax.experimental import pallas as pl
from jax.experimental.pallas import tpu as pltpu


_VMEM_LIMIT = 48 * 1024 * 1024  # leave headroom under v7x's 64 MiB physical VMEM


def _largest_divisor_tile(n, target):
    """Largest tile <= target that divides n (multiple of 8 preferred)."""
    t = min(n, target)
    if t == n:
        return n
    for cand in range(t, 0, -1):
        if n % cand == 0 and (cand % 8 == 0 or cand == n):
            return cand
    return n


# ---------------------------------------------------------------------------
# Kernel 1: QKV projection (row-tiled; in_proj has no bias; q_bias/v_bias added)
# ---------------------------------------------------------------------------
def qkv_kernel(x_ref, wq_ref, wk_ref, wv_ref, qb_ref, vb_ref,
               q_ref, k_ref, v_ref):
    # TODO(synk): for bf16 production inference cast x/W operands to bf16 here
    # (keep f32 accumulation) to hit the bf16 MXU peak on v5e/v6e/v7x; kept in
    # the input dtype so the f32 reference check below stays tight.
    x = x_ref[...]
    q = jnp.dot(x, wq_ref[...], preferred_element_type=jnp.float32)
    k = jnp.dot(x, wk_ref[...], preferred_element_type=jnp.float32)
    v = jnp.dot(x, wv_ref[...], preferred_element_type=jnp.float32)
    q_ref[...] = (q + qb_ref[...]).astype(q_ref.dtype)
    k_ref[...] = k.astype(k_ref.dtype)
    v_ref[...] = (v + vb_ref[...]).astype(v_ref.dtype)


def qkv_projection(x2d, w_q, w_k, w_v, q_bias, v_bias, *, row_tile=512):
    N, H = x2d.shape
    tm = _largest_divisor_tile(N, row_tile)
    itemsize = jnp.dtype(x2d.dtype).itemsize

    row_spec = pl.BlockSpec((tm, H), lambda i: (i, 0))
    w_spec = pl.BlockSpec((H, H), lambda i: (0, 0))     # weights stay resident
    b_spec = pl.BlockSpec((1, H), lambda i: (0, 0))
    out_sds = jax.ShapeDtypeStruct((N, H), x2d.dtype)

    cost = pl.CostEstimate(
        flops=2 * N * H * 3 * H,
        transcendentals=0,
        bytes_accessed=itemsize * (4 * N * H + 3 * H * H + 2 * H))

    return pl.pallas_call(
        qkv_kernel,
        out_shape=(out_sds, out_sds, out_sds),
        grid_spec=pltpu.PrefetchScalarGridSpec(
            num_scalar_prefetch=0,
            grid=(N // tm,),
            in_specs=[row_spec, w_spec, w_spec, w_spec, b_spec, b_spec],
            out_specs=[row_spec, row_spec, row_spec]),
        compiler_params=pltpu.CompilerParams(
            dimension_semantics=("parallel",),
            vmem_limit_bytes=_VMEM_LIMIT),
        cost_estimate=cost,
    )(x2d, w_q, w_k, w_v, q_bias, v_bias)


# ---------------------------------------------------------------------------
# Kernel 2: flash-style attention with in-kernel XSoftmax mask
#   q/k/v/o layout: [B, S, H] (heads packed along the lane-dense last dim)
#   grid: (batch, q-tiles, kv-tiles); kv axis is the reduction ("arbitrary")
# ---------------------------------------------------------------------------
def attn_kernel(rowm_ref, colm_ref, q_ref, k_ref, v_ref, o_ref,
                m_sc, l_sc, acc_sc, *, num_heads, head_dim, inv_scale):
    ki = pl.program_id(2)

    @pl.when(ki == 0)
    def _():
        m_sc[...] = jnp.full_like(m_sc, -jnp.inf)
        l_sc[...] = jnp.zeros_like(l_sc)
        acc_sc[...] = jnp.zeros_like(acc_sc)

    neg = jnp.finfo(jnp.float32).min
    rm = rowm_ref[0].astype(jnp.float32)          # [TQ, 1]
    cm = colm_ref[0].astype(jnp.float32)          # [1, TKV]
    mask = (rm * cm) > 0.0                        # [TQ, TKV] XSoftmax mask

    d = head_dim
    # TODO(synk): heads are processed one at a time (64-wide MXU contractions);
    # packing 2-4 heads per matmul would further fill the 256-wide MXU.
    for h in range(num_heads):
        q = q_ref[0, :, pl.ds(h * d, d)].astype(jnp.float32) * inv_scale
        k = k_ref[0, :, pl.ds(h * d, d)].astype(jnp.float32)
        v = v_ref[0, :, pl.ds(h * d, d)].astype(jnp.float32)

        # scores: contract over head_dim (last dim of both) -> [TQ, TKV]
        s = jax.lax.dot_general(q, k, (((1,), (1,)), ((), ())),
                                preferred_element_type=jnp.float32)
        s = jnp.where(mask, s, neg)

        m_prev = m_sc[h]                                          # [TQ, 1]
        m_new = jnp.maximum(m_prev, jnp.max(s, axis=-1, keepdims=True))
        alpha = jnp.exp(m_prev - m_new)
        p = jnp.exp(s - m_new)
        # denominator includes masked entries (== reference XSoftmax), the
        # numerator uses the post-softmax-zeroed probabilities.
        l_sc[h] = alpha * l_sc[h] + jnp.sum(p, axis=-1, keepdims=True)
        p = jnp.where(mask, p, 0.0)
        acc_sc[h] = alpha * acc_sc[h] + jnp.dot(
            p, v, preferred_element_type=jnp.float32)
        m_sc[h] = m_new

    @pl.when(ki == pl.num_programs(2) - 1)
    def _():
        for h in range(num_heads):
            inv_l = pl.reciprocal(l_sc[h], approx=True)           # EUP slot
            o_ref[0, :, pl.ds(h * d, d)] = (acc_sc[h] * inv_l).astype(o_ref.dtype)


def attention(q3, k3, v3, rowmask, colmask, *, num_heads, scale, seq_tile=256):
    B, S, H = q3.shape
    d = H // num_heads
    tq = _largest_divisor_tile(S, seq_tile)
    tkv = tq
    itemsize = jnp.dtype(q3.dtype).itemsize

    qo_spec = pl.BlockSpec((1, tq, H), lambda b, qi, ki: (b, qi, 0))
    kv_spec = pl.BlockSpec((1, tkv, H), lambda b, qi, ki: (b, ki, 0))
    rm_spec = pl.BlockSpec((1, tq, 1), lambda b, qi, ki: (b, qi, 0))
    cm_spec = pl.BlockSpec((1, 1, tkv), lambda b, qi, ki: (b, 0, ki))

    cost = pl.CostEstimate(
        flops=4 * B * num_heads * S * S * d,
        transcendentals=B * num_heads * S * S,
        bytes_accessed=itemsize * 4 * B * S * H + 4 * 2 * B * S)

    return pl.pallas_call(
        functools.partial(attn_kernel, num_heads=num_heads, head_dim=d,
                          inv_scale=1.0 / scale),
        out_shape=jax.ShapeDtypeStruct((B, S, H), q3.dtype),
        grid_spec=pltpu.PrefetchScalarGridSpec(
            num_scalar_prefetch=0,
            grid=(B, S // tq, S // tkv),
            in_specs=[rm_spec, cm_spec, qo_spec, kv_spec, kv_spec],
            out_specs=qo_spec,
            scratch_shapes=[
                pltpu.VMEM((num_heads, tq, 1), jnp.float32),   # running max
                pltpu.VMEM((num_heads, tq, 1), jnp.float32),   # running sum
                pltpu.VMEM((num_heads, tq, d), jnp.float32),   # accumulator
            ]),
        compiler_params=pltpu.CompilerParams(
            dimension_semantics=("parallel", "parallel", "arbitrary"),
            vmem_limit_bytes=_VMEM_LIMIT),
        cost_estimate=cost,
    )(rowmask, colmask, q3, k3, v3)


# ---------------------------------------------------------------------------
# Kernel 3: output dense + residual add + TF-style LayerNorm (row-tiled)
# ---------------------------------------------------------------------------
def out_ln_kernel(x_ref, w_ref, b_ref, res_ref, g_ref, beta_ref, o_ref, *, eps):
    h = jnp.dot(x_ref[...], w_ref[...], preferred_element_type=jnp.float32)
    h = h + b_ref[...] + res_ref[...].astype(jnp.float32)        # bias + residual
    u = jnp.mean(h, axis=-1, keepdims=True)
    dlt = h - u
    var = jnp.mean(dlt * dlt, axis=-1, keepdims=True)
    xn = dlt * jax.lax.rsqrt(var + eps)
    o_ref[...] = (g_ref[...] * xn + beta_ref[...]).astype(o_ref.dtype)


def output_dense_layernorm(ctx2d, w_o, b_o, res2d, ln_w, ln_b, *, eps,
                           row_tile=512):
    N, H = ctx2d.shape
    tm = _largest_divisor_tile(N, row_tile)
    itemsize = jnp.dtype(ctx2d.dtype).itemsize

    row_spec = pl.BlockSpec((tm, H), lambda i: (i, 0))
    w_spec = pl.BlockSpec((H, H), lambda i: (0, 0))     # weight stays resident
    vec_spec = pl.BlockSpec((1, H), lambda i: (0, 0))

    cost = pl.CostEstimate(
        flops=2 * N * H * H + 8 * N * H,
        transcendentals=N,
        bytes_accessed=itemsize * (3 * N * H + H * H + 3 * H))

    return pl.pallas_call(
        functools.partial(out_ln_kernel, eps=eps),
        out_shape=jax.ShapeDtypeStruct((N, H), ctx2d.dtype),
        grid_spec=pltpu.PrefetchScalarGridSpec(
            num_scalar_prefetch=0,
            grid=(N // tm,),
            in_specs=[row_spec, w_spec, vec_spec, row_spec, vec_spec, vec_spec],
            out_specs=row_spec),
        compiler_params=pltpu.CompilerParams(
            dimension_semantics=("parallel",),
            vmem_limit_bytes=_VMEM_LIMIT),
        cost_estimate=cost,
    )(ctx2d, w_o, b_o, res2d, ln_w, ln_b)


# ---------------------------------------------------------------------------
# Full BertAttention forward (DeBERTa, no relative attention branch)
# ---------------------------------------------------------------------------
def bert_attention_forward(hidden, attention_mask, params, *, num_heads, eps):
    B, S, H = hidden.shape
    d = H // num_heads
    N = B * S

    x2d = hidden.reshape(N, H)

    # Split the fused in_proj weight once (static, host side) so the kernel
    # never slices an unaligned fused matmul result.
    w_qkv = params["w_qkv"]
    w_q, w_k, w_v = w_qkv[:, :H], w_qkv[:, H:2 * H], w_qkv[:, 2 * H:]

    # 1) row-tiled QKV projection
    q2d, k2d, v2d = qkv_projection(x2d, w_q, w_k, w_v,
                                   params["q_bias"], params["v_bias"])

    # 2) flash-style attention; heads stay packed in the lane-dense last dim
    #    (free reshapes only, no transposes). Mask is rebuilt in-kernel from
    #    tiny row/col vectors instead of a [B,1,S,S] HBM tensor.
    q3 = q2d.reshape(B, S, H)
    k3 = k2d.reshape(B, S, H)
    v3 = v2d.reshape(B, S, H)

    m = attention_mask.astype(jnp.float32)
    rowmask = m.reshape(B, S, 1)
    colmask = m.reshape(B, 1, S)

    scale = math.sqrt(d * 1)  # scale_factor = 1 (empty pos_att_type)
    ctx3 = attention(q3, k3, v3, rowmask, colmask,
                     num_heads=num_heads, scale=scale)
    ctx2d = ctx3.reshape(N, H)

    # 3) output dense + residual (query_states=None -> residual is hidden) + LN
    out2d = output_dense_layernorm(ctx2d, params["w_o"], params["b_o"], x2d,
                                   params["ln_w"], params["ln_b"], eps=eps)
    return out2d.reshape(B, S, H)


# ---------------------------------------------------------------------------
# Pure-JAX reference (same math) for a sanity check
# ---------------------------------------------------------------------------
def bert_attention_ref(hidden, attention_mask, params, *, num_heads, eps):
    B, S, H = hidden.shape
    d = H // num_heads
    x2d = hidden.reshape(B * S, H)
    qkv = x2d @ params["w_qkv"]
    q = qkv[:, :H] + params["q_bias"][0]
    k = qkv[:, H:2 * H]
    v = qkv[:, 2 * H:] + params["v_bias"][0]
    sh = lambda t: t.reshape(B, S, num_heads, d).transpose(0, 2, 1, 3)
    q4, k4, v4 = sh(q), sh(k), sh(v)
    m = attention_mask.astype(jnp.float32)
    mask4 = (m[:, None, :, None] * m[:, None, None, :])
    scores = jnp.einsum("bhqd,bhkd->bhqk", q4 / math.sqrt(d), k4)
    neg = jnp.finfo(jnp.float32).min
    scores = jnp.where(mask4 > 0, scores, neg)
    probs = jax.nn.softmax(scores, axis=-1)
    probs = jnp.where(mask4 > 0, probs, 0.0)
    ctx = jnp.einsum("bhqk,bhkd->bhqd", probs, v4)
    ctx2d = ctx.transpose(0, 2, 1, 3).reshape(B * S, H)
    h = ctx2d @ params["w_o"] + params["b_o"][0] + x2d
    u = jnp.mean(h, axis=-1, keepdims=True)
    var = jnp.mean((h - u) ** 2, axis=-1, keepdims=True)
    xn = (h - u) / jnp.sqrt(var + eps)
    y = params["ln_w"][0] * xn + params["ln_b"][0]
    return y.reshape(B, S, H)


if __name__ == "__main__":
    # Small config implied by the module: batch=2, seq=8, hidden=32, heads=4
    B, S, H, NH = 2, 8, 32, 4
    EPS = 1e-12

    key = jax.random.PRNGKey(0)
    ks = jax.random.split(key, 8)

    params = {
        # weights stored [in, out]
        "w_qkv": (jax.random.normal(ks[0], (H, 3 * H), jnp.float32) * 0.02),
        "q_bias": (jax.random.normal(ks[1], (1, H), jnp.float32) * 0.02),
        "v_bias": (jax.random.normal(ks[2], (1, H), jnp.float32) * 0.02),
        "w_o":   (jax.random.normal(ks[3], (H, H), jnp.float32) * 0.02),
        "b_o":   (jax.random.normal(ks[4], (1, H), jnp.float32) * 0.02),
        "ln_w":  jnp.ones((1, H), jnp.float32),
        "ln_b":  jnp.zeros((1, H), jnp.float32),
    }

    hidden = jax.random.normal(ks[5], (B, S, H), jnp.float32)
    # mask out the last two positions of batch 1 to exercise XSoftmax masking
    attention_mask = jnp.ones((B, S), jnp.int32).at[1, -2:].set(0)

    # TODO(synk): StableDropout / pos_dropout are identity in eval mode and the
    # relative-attention (disentangled bias) branch is skipped because
    # relative_pos / rel_embeddings are None in this forward configuration.

    out = bert_attention_forward(hidden, attention_mask, params,
                                 num_heads=NH, eps=EPS)
    out = jax.block_until_ready(out)

    ref = bert_attention_ref(hidden, attention_mask, params,
                             num_heads=NH, eps=EPS)
    assert out.shape == (B, S, H)
    max_err = float(jnp.max(jnp.abs(out - ref)))
    assert jnp.allclose(out, ref, atol=2e-3, rtol=2e-3), (
        f"mismatch vs reference (max abs err {max_err})")

    print("KERNEL_OK")
</pallas_src>

<mosaic_0001>
module attributes {stable_mosaic.version = 11 : i64} {
  func.func @qkv_kernel(%arg0: i32, %arg1: memref<16x32xf32, #tpu.memory_space<vmem>>, %arg2: memref<32x32xf32, #tpu.memory_space<vmem>>, %arg3: memref<32x32xf32, #tpu.memory_space<vmem>>, %arg4: memref<32x32xf32, #tpu.memory_space<vmem>>, %arg5: memref<1x32xf32, #tpu.memory_space<vmem>>, %arg6: memref<1x32xf32, #tpu.memory_space<vmem>>, %arg7: memref<16x32xf32, #tpu.memory_space<vmem>>, %arg8: memref<16x32xf32, #tpu.memory_space<vmem>>, %arg9: memref<16x32xf32, #tpu.memory_space<vmem>>) attributes {dimension_semantics = [#tpu.dimension_semantics<parallel>], iteration_bounds = array<i64: 1>, scalar_prefetch = 0 : i64, scratch_operands = 0 : i64, tpu.core_type = #tpu.core_type<tc>, window_params = [{transform_indices = @transform_0, window_bounds = array<i64: 16, 32>}, {pipeline_mode = #tpu.pipeline_mode<synchronous>, transform_indices = @transform_1, window_bounds = array<i64: 32, 32>}, {pipeline_mode = #tpu.pipeline_mode<synchronous>, transform_indices = @transform_2, window_bounds = array<i64: 32, 32>}, {pipeline_mode = #tpu.pipeline_mode<synchronous>, transform_indices = @transform_3, window_bounds = array<i64: 32, 32>}, {pipeline_mode = #tpu.pipeline_mode<synchronous>, transform_indices = @transform_4, window_bounds = array<i64: 1, 32>}, {pipeline_mode = #tpu.pipeline_mode<synchronous>, transform_indices = @transform_5, window_bounds = array<i64: 1, 32>}, {transform_indices = @transform_6, window_bounds = array<i64: 16, 32>}, {transform_indices = @transform_7, window_bounds = array<i64: 16, 32>}, {transform_indices = @transform_8, window_bounds = array<i64: 16, 32>}]} {
    %c0 = arith.constant 0 : index
    %c0_0 = arith.constant 0 : index
    %0 = vector.load %arg1[%c0, %c0_0] : memref<16x32xf32, #tpu.memory_space<vmem>>, vector<16x32xf32>
    %c0_1 = arith.constant 0 : index
    %c0_2 = arith.constant 0 : index
    %1 = vector.load %arg2[%c0_1, %c0_2] : memref<32x32xf32, #tpu.memory_space<vmem>>, vector<32x32xf32>
    %cst = arith.constant dense<0.000000e+00> : vector<16x32xf32>
    %2 = tpu.matmul %0, %1, %cst {dimension_numbers = #tpu.dot_dimension_numbers<[1], [0], [0], [1], [0, 0, 1, 1], [], []>} : vector<16x32xf32>, vector<32x32xf32>, vector<16x32xf32> -> vector<16x32xf32>
    %c0_3 = arith.constant 0 : index
    %c0_4 = arith.constant 0 : index
    %3 = vector.load %arg3[%c0_3, %c0_4] : memref<32x32xf32, #tpu.memory_space<vmem>>, vector<32x32xf32>
    %cst_5 = arith.constant dense<0.000000e+00> : vector<16x32xf32>
    %4 = tpu.matmul %0, %3, %cst_5 {dimension_numbers = #tpu.dot_dimension_numbers<[1], [0], [0], [1], [0, 0, 1, 1], [], []>} : vector<16x32xf32>, vector<32x32xf32>, vector<16x32xf32> -> vector<16x32xf32>
    %c0_6 = arith.constant 0 : index
    %c0_7 = arith.constant 0 : index
    %5 = vector.load %arg4[%c0_6, %c0_7] : memref<32x32xf32, #tpu.memory_space<vmem>>, vector<32x32xf32>
    %cst_8 = arith.constant dense<0.000000e+00> : vector<16x32xf32>
    %6 = tpu.matmul %0, %5, %cst_8 {dimension_numbers = #tpu.dot_dimension_numbers<[1], [0], [0], [1], [0, 0, 1, 1], [], []>} : vector<16x32xf32>, vector<32x32xf32>, vector<16x32xf32> -> vector<16x32xf32>
    %c0_9 = arith.constant 0 : index
    %c0_10 = arith.constant 0 : index
    %7 = vector.load %arg5[%c0_9, %c0_10] : memref<1x32xf32, #tpu.memory_space<vmem>>, vector<1x32xf32>
    %8 = vector.broadcast %7 : vector<1x32xf32> to vector<16x32xf32>
    %9 = arith.addf %2, %8 : vector<16x32xf32>
    %c0_11 = arith.constant 0 : index
    %c0_12 = arith.constant 0 : index
    %10 = vector.load %arg7[%c0_11, %c0_12] : memref<16x32xf32, #tpu.memory_space<vmem>>, vector<16x32xf32>
    tpu.vector_store %arg7[%c0_11, %c0_12], %9 {strides = array<i32>} : memref<16x32xf32, #tpu.memory_space<vmem>>, vector<16x32xf32>,
    %c0_13 = arith.constant 0 : index
    %c0_14 = arith.constant 0 : index
    %11 = vector.load %arg8[%c0_13, %c0_14] : memref<16x32xf32, #tpu.memory_space<vmem>>, vector<16x32xf32>
    tpu.vector_store %arg8[%c0_13, %c0_14], %4 {strides = array<i32>} : memref<16x32xf32, #tpu.memory_space<vmem>>, vector<16x32xf32>,
    %c0_15 = arith.constant 0 : index
    %c0_16 = arith.constant 0 : index
    %12 = vector.load %arg6[%c0_15, %c0_16] : memref<1x32xf32, #tpu.memory_space<vmem>>, vector<1x32xf32>
    %13 = vector.broadcast %12 : vector<1x32xf32> to vector<16x32xf32>
    %14 = arith.addf %6, %13 : vector<16x32xf32>
    %c0_17 = arith.constant 0 : index
    %c0_18 = arith.constant 0 : index
    %15 = vector.load %arg9[%c0_17, %c0_18] : memref<16x32xf32, #tpu.memory_space<vmem>>, vector<16x32xf32>
    tpu.vector_store %arg9[%c0_17, %c0_18], %14 {strides = array<i32>} : memref<16x32xf32, #tpu.memory_space<vmem>>, vector<16x32xf32>,
    return
  }
  func.func @transform_0(%arg0: i32) -> (i32, i32) {
    %c0_i32 = arith.constant 0 : i32
    %c0_i32_0 = arith.constant 0 : i32
    return %arg0, %c0_i32 : i32, i32
  }
  func.func @transform_1(%arg0: i32) -> (i32, i32) {
    %c0_i32 = arith.constant 0 : i32
    %c0_i32_0 = arith.constant 0 : i32
    %c0_i32_1 = arith.constant 0 : i32
    return %c0_i32, %c0_i32_0 : i32, i32
  }
  func.func @transform_2(%arg0: i32) -> (i32, i32) {
    %c0_i32 = arith.constant 0 : i32
    %c0_i32_0 = arith.constant 0 : i32
    %c0_i32_1 = arith.constant 0 : i32
    return %c0_i32, %c0_i32_0 : i32, i32
  }
  func.func @transform_3(%arg0: i32) -> (i32, i32) {
    %c0_i32 = arith.constant 0 : i32
    %c0_i32_0 = arith.constant 0 : i32
    %c0_i32_1 = arith.constant 0 : i32
    return %c0_i32, %c0_i32_0 : i32, i32
  }
  func.func @transform_4(%arg0: i32) -> (i32, i32) {
    %c0_i32 = arith.constant 0 : i32
    %c0_i32_0 = arith.constant 0 : i32
    %c0_i32_1 = arith.constant 0 : i32
    return %c0_i32, %c0_i32_0 : i32, i32
  }
  func.func @transform_5(%arg0: i32) -> (i32, i32) {
    %c0_i32 = arith.constant 0 : i32
    %c0_i32_0 = arith.constant 0 : i32
    %c0_i32_1 = arith.constant 0 : i32
    return %c0_i32, %c0_i32_0 : i32, i32
  }
  func.func @transform_6(%arg0: i32) -> (i32, i32) {
    %c0_i32 = arith.constant 0 : i32
    %c0_i32_0 = arith.constant 0 : i32
    return %arg0, %c0_i32 : i32, i32
  }
  func.func @transform_7(%arg0: i32) -> (i32, i32) {
    %c0_i32 = arith.constant 0 : i32
    %c0_i32_0 = arith.constant 0 : i32
    return %arg0, %c0_i32 : i32, i32
  }
  func.func @transform_8(%arg0: i32) -> (i32, i32) {
    %c0_i32 = arith.constant 0 : i32
    %c0_i32_0 = arith.constant 0 : i32
    return %arg0, %c0_i32 : i32, i32
  }
}

</mosaic_0001>

<llo_original>
// kernel: tpu_custom_call.1
$region0: #{tpu_custom_call.1}
  #allocation0 [shape = 'u32[]', space=smem, size = 0x4, offset = 0x4, fixed_abs, tag = 'smem constant byte address 0x4 - core index']
  #allocation1 [shape = 'u32[144,128]{1,0:T(1,128)}', space=vmem, size = 0x12000, scoped, tag = 'internal scratch']
  %s0 = inlined_call_operand.hbm [shape: f32[16,32], index: 0, kind: input, shape index: {}]
  %s1 = inlined_call_operand.hbm [shape: f32[32,32], index: 1, kind: input, shape index: {}]
  %s2 = inlined_call_operand.hbm [shape: f32[32,32], index: 2, kind: input, shape index: {}]
  %s3 = inlined_call_operand.hbm [shape: f32[32,32], index: 3, kind: input, shape index: {}]
  %s4 = inlined_call_operand.vmem [shape: f32[1,32], index: 4, kind: input, shape index: {}]
  %s5 = inlined_call_operand.vmem [shape: f32[1,32], index: 5, kind: input, shape index: {}]
  %s6 = inlined_call_operand.hbm [shape: f32[16,32], index: 6, kind: output, shape index: {0}]
  %s7 = inlined_call_operand.hbm [shape: f32[16,32], index: 7, kind: output, shape index: {1}]
  %s8 = inlined_call_operand.hbm [shape: f32[16,32], index: 8, kind: output, shape index: {2}]
  %9 = xla_tuple %s6, %s7, %s8
  %s10 = sld [smem:[#allocation0]]
  $region66: #{tpu_custom_call.1} parent=0
    _
  %s12 = ssub.s32 1, %s10
  %s13 = scalar_select 0, %s12, %s10
  $region1: #{tpu_custom_call.1} parent=0
    #allocation2 [shape = 'u8[8192]{0}', space=vmem, size = 0x2000, scoped, tag = 'input window, operand 0, single buffered']
    #allocation3 [shape = 's32[1]{0}', space=sflag, size = 0x4, scoped, tag = 'scoped memory for tpu_custom_call.1']
    #allocation4 [shape = 's32[1]{0}', space=sflag, size = 0x4, scoped, tag = 'scoped memory for tpu_custom_call.1']
    #allocation5 [shape = 'u8[16384]{0}', space=vmem, size = 0x4000, scoped, tag = 'input window, operand 1, single buffered']
    #allocation6 [shape = 's32[1]{0}', space=sflag, size = 0x4, scoped, tag = 'scoped memory for tpu_custom_call.1']
    #allocation7 [shape = 'u8[16384]{0}', space=vmem, size = 0x4000, scoped, tag = 'input window, operand 2, single buffered']
    #allocation8 [shape = 'u8[16384]{0}', space=vmem, size = 0x4000, scoped, tag = 'input window, operand 3, single buffered']
    #allocation9 [shape = 's32[1]{0}', space=sflag, size = 0x4, scoped, tag = 'scoped memory for tpu_custom_call.1']
    #allocation10 [shape = 'u8[8192]{0}', space=vmem, size = 0x2000, scoped, tag = 'output window, operand 0, single buffered']
    #allocation11 [shape = 'u8[8192]{0}', space=vmem, size = 0x2000, scoped, tag = 'output window, operand 1, single buffered']
    #allocation12 [shape = 's32[1]{0}', space=sflag, size = 0x4, scoped, tag = 'scoped memory for tpu_custom_call.1']
    #allocation13 [shape = 'u8[8192]{0}', space=vmem, size = 0x2000, scoped, tag = 'output window, operand 2, single buffered']
    %14 = vsyncpa [#allocation3], 0
    %15 = vsyncpa [#allocation6], 0
    %16 = vsyncpa [#allocation9], 0
    %17 = vsyncpa [#allocation4], 0
    %18 = vsyncpa [#allocation12], 0
    // Predicated region
    $region2: #{tpu_custom_call.1} parent=1 // pred_check
      _
    $region3: #{tpu_custom_call.1} parent=1 // pred_check_branch
      %20 = sbr.rel (0) target = $region5
    $region4: #{tpu_custom_call.1} parent=1 // pred_region
      %s22 = ssub.s32 256, 256
      %23 = vsyncadd [#allocation3], %s22
      %s24 = sshll.u32 [#allocation2], 4
      %s25 = int_to_ptr.vmem [resolvable:$true] %s24
      %30 = dma.hbm_to_vmem [thread:$0]  %s0, 256, %s25, [#allocation3], 128, 128, 8
    $region5: #{tpu_custom_call.1} parent=1 // pred_fallthru
      _
    // Predicated region
    $region6: #{tpu_custom_call.1} parent=1 // pred_check
      _
    $region7: #{tpu_custom_call.1} parent=1 // pred_check_branch
      %32 = sbr.rel (0) target = $region9
    $region8: #{tpu_custom_call.1} parent=1 // pred_region
      %s34 = ssub.s32 512, 512
      %35 = vsyncadd [#allocation6], %s34
      %s36 = sshll.u32 [#allocation5], 4
      %s37 = int_to_ptr.vmem [resolvable:$true] %s36
      %42 = dma.hbm_to_vmem [thread:$0]  %s1, 512, %s37, [#allocation6], 128, 128, 8
    $region9: #{tpu_custom_call.1} parent=1 // pred_fallthru
      _
    // Predicated region
    $region10: #{tpu_custom_call.1} parent=1 // pred_check
      _
    $region11: #{tpu_custom_call.1} parent=1 // pred_check_branch
      %44 = sbr.rel (0) target = $region13
    $region12: #{tpu_custom_call.1} parent=1 // pred_region
      %s46 = ssub.s32 512, 512
      %47 = vsyncadd [#allocation6], %s46
      %s48 = sshll.u32 [#allocation7], 4
      %s49 = int_to_ptr.vmem [resolvable:$true] %s48
      %54 = dma.hbm_to_vmem [thread:$0]  %s2, 512, %s49, [#allocation6], 128, 128, 8
    $region13: #{tpu_custom_call.1} parent=1 // pred_fallthru
      _
    // Predicated region
    $region14: #{tpu_custom_call.1} parent=1 // pred_check
      _
    $region15: #{tpu_custom_call.1} parent=1 // pred_check_branch
      %56 = sbr.rel (0) target = $region17
    $region16: #{tpu_custom_call.1} parent=1 // pred_region
      %s58 = ssub.s32 512, 512
      %59 = vsyncadd [#allocation9], %s58
      %s60 = sshll.u32 [#allocation8], 4
      %s61 = int_to_ptr.vmem [resolvable:$true] %s60
      %66 = dma.hbm_to_vmem [thread:$0]  %s3, 512, %s61, [#allocation9], 128, 128, 8
    $region17: #{tpu_custom_call.1} parent=1 // pred_fallthru
      _
    // Predicated region
    $region18: #{tpu_custom_call.1} parent=1 // pred_check
      _
    $region19: #{tpu_custom_call.1} parent=1 // pred_check_branch
      %68 = sbr.rel (0) target = $region21
    $region20: #{tpu_custom_call.1} parent=1 // pred_region
      _
    $region21: #{tpu_custom_call.1} parent=1 // pred_fallthru
      _
    // Predicated region
    $region22: #{tpu_custom_call.1} parent=1 // pred_check
      _
    $region23: #{tpu_custom_call.1} parent=1 // pred_check_branch
      %70 = sbr.rel (0) target = $region25
    $region24: #{tpu_custom_call.1} parent=1 // pred_region
      _
    $region25: #{tpu_custom_call.1} parent=1 // pred_fallthru
      _
    // Predicated region
    $region26: #{tpu_custom_call.1} parent=1 // pred_check
      _
    $region27: #{tpu_custom_call.1} parent=1 // pred_check_branch
      %72 = sbr.rel (0) target = $region29
    $region28: #{tpu_custom_call.1} parent=1 // pred_region
      %73 = dma.done [#allocation3], 256
    $region29: #{tpu_custom_call.1} parent=1 // pred_fallthru
      _
    // Predicated region
    $region30: #{tpu_custom_call.1} parent=1 // pred_check
      _
    $region31: #{tpu_custom_call.1} parent=1 // pred_check_branch
      %75 = sbr.rel (0) target = $region33
    $region32: #{tpu_custom_call.1} parent=1 // pred_region
      %76 = dma.done [#allocation6], 512
    $region33: #{tpu_custom_call.1} parent=1 // pred_fallthru
      _
    // Predicated region
    $region34: #{tpu_custom_call.1} parent=1 // pred_check
      _
    $region35: #{tpu_custom_call.1} parent=1 // pred_check_branch
      %78 = sbr.rel (0) target = $region37
    $region36: #{tpu_custom_call.1} parent=1 // pred_region
      %79 = dma.done [#allocation6], 512
    $region37: #{tpu_custom_call.1} parent=1 // pred_fallthru
      _
    // Predicated region
    $region38: #{tpu_custom_call.1} parent=1 // pred_check
      _
    $region39: #{tpu_custom_call.1} parent=1 // pred_check_branch
      %81 = sbr.rel (0) target = $region41
    $region40: #{tpu_custom_call.1} parent=1 // pred_region
      %82 = dma.done [#allocation9], 512
    $region41: #{tpu_custom_call.1} parent=1 // pred_fallthru
      _
    %v83 = vld [vmem:[#allocation2] sm:$0xff]
    %v84 = vld [vmem:[#allocation2 + $0x8] sm:$0xff]
    %v85 = vld [vmem:[#allocation5] sm:$0xff]
    %v86 = vld [vmem:[#allocation5 + $0x8] sm:$0xff]
    %v87 = vld [vmem:[#allocation5 + $0x10] sm:$0xff]
    %v88 = vld [vmem:[#allocation5 + $0x18] sm:$0xff]
    %v89 = vld [vmem:[#allocation7] sm:$0xff]
    %v90 = vld [vmem:[#allocation7 + $0x8] sm:$0xff]
    %v91 = vld [vmem:[#allocation7 + $0x10] sm:$0xff]
    %v92 = vld [vmem:[#allocation7 + $0x18] sm:$0xff]
    %vm93 = vcmask 261120
    %v95 = vsel %vm93, %v83, 0
    %v98 = vsel %vm93, %v84, 0
    %100 = vmatprep.subr.mxu0 0.0
    %101 = vmatpush1.msra.mxu0 0.0
    %102 = vmatprep.subr.mxu0 0.0
    %103 = vmatpush1.msra.mxu0 0.0
    %104 = vmatprep.subr.mxu0 0.0
    %105 = vmatpush1.msra.mxu0 0.0
    %106 = vmatprep.subr.mxu0 0.0
    %107 = vmatpush1.msra.mxu0 0.0
    %108 = vmatprep.subr.mxu0 0.0
    %109 = vmatpush1.msra.mxu0 0.0
    %110 = vmatprep.subr.mxu0 0.0
    %111 = vmatpush1.msra.mxu0 0.0
    %112 = vmatprep.subr.mxu0 0.0
    %113 = vmatpush1.msra.mxu0 0.0
    %114 = vmatprep.subr.mxu0 0.0
    %115 = vmatpush1.msra.mxu0 0.0
    %116 = vmatprep.subr.mxu0 0.0
    %117 = vmatpush1.msra.mxu0 0.0
    %118 = vmatprep.subr.mxu0 0.0
    %119 = vmatpush1.msra.mxu0 0.0
    %120 = vmatprep.subr.mxu0 0.0
    %121 = vmatpush1.msra.mxu0 0.0
    %122 = vmatprep.subr.mxu0 0.0
    %123 = vmatpush1.msra.mxu0 0.0
    %124 = vmatprep.subr.mxu0 0.0
    %125 = vmatpush1.msra.mxu0 %v92
    %126 = vmatprep.subr.mxu0 0.0
    %127 = vmatpush1.msra.mxu0 %v91
    %128 = vmatprep.subr.mxu0 0.0
    %129 = vmatpush1.msra.mxu0 %v90
    %130 = vmatprep.subr.mxu0 0.0
    %131 = vmatpush1.msra.mxu0 %v89
    %132 = vmatprep.subr.mxu0 0.0
    %133 = vmatpush2.msra.mxu0 0.0
    %134 = vmatprep.subr.mxu0 0.0
    %135 = vmatpush2.msra.mxu0 0.0
    %136 = vmatprep.subr.mxu0 0.0
    %137 = vmatpush2.msra.mxu0 0.0
    %138 = vmatprep.subr.mxu0 0.0
    %139 = vmatpush2.msra.mxu0 0.0
    %140 = vmatprep.subr.mxu0 0.0
    %141 = vmatpush2.msra.mxu0 0.0
    %142 = vmatprep.subr.mxu0 0.0
    %143 = vmatpush2.msra.mxu0 0.0
    %144 = vmatprep.subr.mxu0 0.0
    %145 = vmatpush2.msra.mxu0 0.0
    %146 = vmatprep.subr.mxu0 0.0
    %147 = vmatpush2.msra.mxu0 0.0
    %148 = vmatprep.subr.mxu0 0.0
    %149 = vmatpush2.msra.mxu0 0.0
    %150 = vmatprep.subr.mxu0 0.0
    %151 = vmatpush2.msra.mxu0 0.0
    %152 = vmatprep.subr.mxu0 0.0
    %153 = vmatpush2.msra.mxu0 0.0
    %154 = vmatprep.subr.mxu0 0.0
    %155 = vmatpush2.msra.mxu0 0.0
    %156 = vmatprep.subr.mxu0 0.0
    %157 = vmatpush2.msra.mxu0 0.0
    %158 = vmatprep.subr.mxu0 0.0
    %159 = vmatpush2.msra.mxu0 0.0
    %160 = vmatprep.subr.mxu0 0.0
    %161 = vmatpush2.msra.mxu0 0.0
    %162 = vmatprep.subr.mxu0 0.0
    %163 = vmatpush2.msra.mxu0 0.0
    %164 = vmatprep.mubr.f32.mxu0 0.0
    %165 = vmatmul.mubr.f32.gmra.mxu0 %v95
    %v166 = vpop.f32.mrf.mxu0
    %v167 = vadd.f32 0.0, %v166
    %v168 = vpop.f32.mrf.mxu0
    %169 = vmatprep.mubr.f32.mxu0 0.0
    %170 = vmatmul.mubr.f32.gmra.mxu0 %v98
    %v171 = vpop.f32.mrf.mxu0
    %v172 = vadd.f32 0.0, %v171
    %v173 = vpop.f32.mrf.mxu0
    %174 = vdwg.mxu0
    %v175 = vld [vmem:[#allocation8] sm:$0xff]
    %v176 = vld [vmem:[#allocation8 + $0x8] sm:$0xff]
    %v177 = vld [vmem:[#allocation8 + $0x10] sm:$0xff]
    %v178 = vld [vmem:[#allocation8 + $0x18] sm:$0xff]
    %v179 = vld [vmem:[%s4] sm:$0x1]
    %v181 = vlaneseq
    %v182 = vshrl.u32 %v181, 7
    %v183 = vsub.s32 0, %v182
    %v184 = vrot.slane %v179, %v183
    %186 = vmatprep.subr.mxu0 0.0
    %187 = vmatpush1.msra.mxu0 0.0
    %188 = vmatprep.subr.mxu0 0.0
    %189 = vmatpush1.msra.mxu0 0.0
    %190 = vmatprep.subr.mxu0 0.0
    %191 = vmatpush1.msra.mxu0 0.0
    %192 = vmatprep.subr.mxu0 0.0
    %193 = vmatpush1.msra.mxu0 0.0
    %194 = vmatprep.subr.mxu0 0.0
    %195 = vmatpush1.msra.mxu0 0.0
    %196 = vmatprep.subr.mxu0 0.0
    %197 = vmatpush1.msra.mxu0 0.0
    %198 = vmatprep.subr.mxu0 0.0
    %199 = vmatpush1.msra.mxu0 0.0
    %200 = vmatprep.subr.mxu0 0.0
    %201 = vmatpush1.msra.mxu0 0.0
    %202 = vmatprep.subr.mxu0 0.0
    %203 = vmatpush1.msra.mxu0 0.0
    %204 = vmatprep.subr.mxu0 0.0
    %205 = vmatpush1.msra.mxu0 0.0
    %206 = vmatprep.subr.mxu0 0.0
    %207 = vmatpush1.msra.mxu0 0.0
    %208 = vmatprep.subr.mxu0 0.0
    %209 = vmatpush1.msra.mxu0 0.0
    %210 = vmatprep.subr.mxu0 0.0
    %211 = vmatpush1.msra.mxu0 %v88
    %212 = vmatprep.subr.mxu0 0.0
    %213 = vmatpush1.msra.mxu0 %v87
    %214 = vmatprep.subr.mxu0 0.0
    %215 = vmatpush1.msra.mxu0 %v86
    %216 = vmatprep.subr.mxu0 0.0
    %217 = vmatpush1.msra.mxu0 %v85
    %218 = vmatprep.subr.mxu0 0.0
    %219 = vmatpush2.msra.mxu0 0.0
    %220 = vmatprep.subr.mxu0 0.0
    %221 = vmatpush2.msra.mxu0 0.0
    %222 = vmatprep.subr.mxu0 0.0
    %223 = vmatpush2.msra.mxu0 0.0
    %224 = vmatprep.subr.mxu0 0.0
    %225 = vmatpush2.msra.mxu0 0.0
    %226 = vmatprep.subr.mxu0 0.0
    %227 = vmatpush2.msra.mxu0 0.0
    %228 = vmatprep.subr.mxu0 0.0
    %229 = vmatpush2.msra.mxu0 0.0
    %230 = vmatprep.subr.mxu0 0.0
    %231 = vmatpush2.msra.mxu0 0.0
    %232 = vmatprep.subr.mxu0 0.0
    %233 = vmatpush2.msra.mxu0 0.0
    %234 = vmatprep.subr.mxu0 0.0
    %235 = vmatpush2.msra.mxu0 0.0
    %236 = vmatprep.subr.mxu0 0.0
    %237 = vmatpush2.msra.mxu0 0.0
    %238 = vmatprep.subr.mxu0 0.0
    %239 = vmatpush2.msra.mxu0 0.0
    %240 = vmatprep.subr.mxu0 0.0
    %241 = vmatpush2.msra.mxu0 0.0
    %242 = vmatprep.subr.mxu0 0.0
    %243 = vmatpush2.msra.mxu0 0.0
    %244 = vmatprep.subr.mxu0 0.0
    %245 = vmatpush2.msra.mxu0 0.0
    %246 = vmatprep.subr.mxu0 0.0
    %247 = vmatpush2.msra.mxu0 0.0
    %248 = vmatprep.subr.mxu0 0.0
    %249 = vmatpush2.msra.mxu0 0.0
    %250 = vmatprep.mubr.f32.mxu0 0.0
    %251 = vmatmul.mubr.f32.gmra.mxu0 %v95
    %v252 = vpop.f32.mrf.mxu0
    %v253 = vadd.f32 %v184, %v252
    %v254 = vpop.f32.mrf.mxu0
    %255 = vmatprep.mubr.f32.mxu0 0.0
    %256 = vmatmul.mubr.f32.gmra.mxu0 %v98
    %v257 = vpop.f32.mrf.mxu0
    %v258 = vadd.f32 %v184, %v257
    %v259 = vpop.f32.mrf.mxu0
    %260 = vdwg.mxu0
    %261 = vst.msk [vmem:[#allocation10] sm:$0xff] %vm93, %v253
    %262 = vst.msk [vmem:[#allocation10 + $0x8] sm:$0xff] %vm93, %v258
    %263 = vst.msk [vmem:[#allocation11] sm:$0xff] %vm93, %v167
    %264 = vst.msk [vmem:[#allocation11 + $0x8] sm:$0xff] %vm93, %v172
    %v265 = vld [vmem:[%s5] sm:$0x1]
    %v267 = vlaneseq
    %v268 = vshrl.u32 %v267, 7
    %v269 = vsub.s32 0, %v268
    %v270 = vrot.slane %v265, %v269
    %272 = vmatprep.subr.mxu0 0.0
    %273 = vmatpush1.msra.mxu0 0.0
    %274 = vmatprep.subr.mxu0 0.0
    %275 = vmatpush1.msra.mxu0 0.0
    %276 = vmatprep.subr.mxu0 0.0
    %277 = vmatpush1.msra.mxu0 0.0
    %278 = vmatprep.subr.mxu0 0.0
    %279 = vmatpush1.msra.mxu0 0.0
    %280 = vmatprep.subr.mxu0 0.0
    %281 = vmatpush1.msra.mxu0 0.0
    %282 = vmatprep.subr.mxu0 0.0
    %283 = vmatpush1.msra.mxu0 0.0
    %284 = vmatprep.subr.mxu0 0.0
    %285 = vmatpush1.msra.mxu0 0.0
    %286 = vmatprep.subr.mxu0 0.0
    %287 = vmatpush1.msra.mxu0 0.0
    %288 = vmatprep.subr.mxu0 0.0
    %289 = vmatpush1.msra.mxu0 0.0
    %290 = vmatprep.subr.mxu0 0.0
    %291 = vmatpush1.msra.mxu0 0.0
    %292 = vmatprep.subr.mxu0 0.0
    %293 = vmatpush1.msra.mxu0 0.0
    %294 = vmatprep.subr.mxu0 0.0
    %295 = vmatpush1.msra.mxu0 0.0
    %296 = vmatprep.subr.mxu0 0.0
    %297 = vmatpush1.msra.mxu0 %v178
    %298 = vmatprep.subr.mxu0 0.0
    %299 = vmatpush1.msra.mxu0 %v177
    %300 = vmatprep.subr.mxu0 0.0
    %301 = vmatpush1.msra.mxu0 %v176
    %302 = vmatprep.subr.mxu0 0.0
    %303 = vmatpush1.msra.mxu0 %v175
    %304 = vmatprep.subr.mxu0 0.0
    %305 = vmatpush2.msra.mxu0 0.0
    %306 = vmatprep.subr.mxu0 0.0
    %307 = vmatpush2.msra.mxu0 0.0
    %308 = vmatprep.subr.mxu0 0.0
    %309 = vmatpush2.msra.mxu0 0.0
    %310 = vmatprep.subr.mxu0 0.0
    %311 = vmatpush2.msra.mxu0 0.0
    %312 = vmatprep.subr.mxu0 0.0
    %313 = vmatpush2.msra.mxu0 0.0
    %314 = vmatprep.subr.mxu0 0.0
    %315 = vmatpush2.msra.mxu0 0.0
    %316 = vmatprep.subr.mxu0 0.0
    %317 = vmatpush2.msra.mxu0 0.0
    %318 = vmatprep.subr.mxu0 0.0
    %319 = vmatpush2.msra.mxu0 0.0
    %320 = vmatprep.subr.mxu0 0.0
    %321 = vmatpush2.msra.mxu0 0.0
    %322 = vmatprep.subr.mxu0 0.0
    %323 = vmatpush2.msra.mxu0 0.0
    %324 = vmatprep.subr.mxu0 0.0
    %325 = vmatpush2.msra.mxu0 0.0
    %326 = vmatprep.subr.mxu0 0.0
    %327 = vmatpush2.msra.mxu0 0.0
    %328 = vmatprep.subr.mxu0 0.0
    %329 = vmatpush2.msra.mxu0 0.0
    %330 = vmatprep.subr.mxu0 0.0
    %331 = vmatpush2.msra.mxu0 0.0
    %332 = vmatprep.subr.mxu0 0.0
    %333 = vmatpush2.msra.mxu0 0.0
    %334 = vmatprep.subr.mxu0 0.0
    %335 = vmatpush2.msra.mxu0 0.0
    %336 = vmatprep.mubr.f32.mxu0 0.0
    %337 = vmatmul.mubr.f32.gmra.mxu0 %v95
    %v338 = vpop.f32.mrf.mxu0
    %v339 = vadd.f32 %v270, %v338
    %v340 = vpop.f32.mrf.mxu0
    %341 = vmatprep.mubr.f32.mxu0 0.0
    %342 = vmatmul.mubr.f32.gmra.mxu0 %v98
    %v343 = vpop.f32.mrf.mxu0
    %v344 = vadd.f32 %v270, %v343
    %v345 = vpop.f32.mrf.mxu0
    %346 = vdwg.mxu0
    %347 = vst.msk [vmem:[#allocation13] sm:$0xff] %vm93, %v339
    %348 = vst.msk [vmem:[#allocation13 + $0x8] sm:$0xff] %vm93, %v344
    // Predicated region
    $region42: #{tpu_custom_call.1} parent=1 // pred_check
      _
    $region43: #{tpu_custom_call.1} parent=1 // pred_check_branch
      %350 = sbr.rel (0) target = $region45
    $region44: #{tpu_custom_call.1} parent=1 // pred_region
      %s352 = ssub.s32 256, 256
      %353 = vsyncadd [#allocation4], %s352
      %s354 = sshll.u32 [#allocation10], 4
      %s355 = int_to_ptr.vmem [resolvable:$true] %s354
      %360 = dma.vmem_to_hbm [thread:$0]  %s355, 256, %s6, [#allocation4], 128, 128, 8
    $region45: #{tpu_custom_call.1} parent=1 // pred_fallthru
      _
    // Predicated region
    $region46: #{tpu_custom_call.1} parent=1 // pred_check
      _
    $region47: #{tpu_custom_call.1} parent=1 // pred_check_branch
      %362 = sbr.rel (0) target = $region49
    $region48: #{tpu_custom_call.1} parent=1 // pred_region
      %s364 = ssub.s32 256, 256
      %365 = vsyncadd [#allocation12], %s364
      %s366 = sshll.u32 [#allocation11], 4
      %s367 = int_to_ptr.vmem [resolvable:$true] %s366
      %372 = dma.vmem_to_hbm [thread:$0]  %s367, 256, %s7, [#allocation12], 128, 128, 8
    $region49: #{tpu_custom_call.1} parent=1 // pred_fallthru
      _
    // Predicated region
    $region50: #{tpu_custom_call.1} parent=1 // pred_check
      _
    $region51: #{tpu_custom_call.1} parent=1 // pred_check_branch
      %374 = sbr.rel (0) target = $region53
    $region52: #{tpu_custom_call.1} parent=1 // pred_region
      %s376 = ssub.s32 256, 256
      %377 = vsyncadd [#allocation12], %s376
      %s378 = sshll.u32 [#allocation13], 4
      %s379 = int_to_ptr.vmem [resolvable:$true] %s378
      %384 = dma.vmem_to_hbm [thread:$0]  %s379, 256, %s8, [#allocation12], 128, 128, 8
    $region53: #{tpu_custom_call.1} parent=1 // pred_fallthru
      _
    // Predicated region
    $region54: #{tpu_custom_call.1} parent=1 // pred_check
      _
    $region55: #{tpu_custom_call.1} parent=1 // pred_check_branch
      %386 = sbr.rel (0) target = $region57
    $region56: #{tpu_custom_call.1} parent=1 // pred_region
      %387 = dma.done [#allocation4], 256
    $region57: #{tpu_custom_call.1} parent=1 // pred_fallthru
      _
    // Predicated region
    $region58: #{tpu_custom_call.1} parent=1 // pred_check
      _
    $region59: #{tpu_custom_call.1} parent=1 // pred_check_branch
      %389 = sbr.rel (0) target = $region61
    $region60: #{tpu_custom_call.1} parent=1 // pred_region
      %390 = dma.done [#allocation12], 256
    $region61: #{tpu_custom_call.1} parent=1 // pred_fallthru
      _
    // Predicated region
    $region62: #{tpu_custom_call.1} parent=1 // pred_check
      _
    $region63: #{tpu_custom_call.1} parent=1 // pred_check_branch
      %392 = sbr.rel (0) target = $region65
    $region64: #{tpu_custom_call.1} parent=1 // pred_region
      %393 = dma.done [#allocation12], 256
    $region65: #{tpu_custom_call.1} parent=1 // pred_fallthru
      _
    %394 = vsyncpa [#allocation3], 1
    %395 = vsyncpa [#allocation6], 1
    %396 = vsyncpa [#allocation9], 1
    %397 = vsyncpa [#allocation4], 1
    %398 = vsyncpa [#allocation12], 1

</llo_original>
